<compile_context>
chip_gen: v6e
topology: v6e:2x2x1
jax: 0.10.0
libtpu: 0.0.40
codegen_flags: <defaults>
</compile_context>

<pallas_src>
import functools

import jax
import jax.numpy as jnp
from jax import lax
from jax.experimental import pallas as pl
from jax.experimental.pallas import tpu as pltpu


def _round_up(x, m):
    return ((x + m - 1) // m) * m


def _transe_kernel(h_idx_ref, r_idx_ref, t_idx_ref,   # scalar-prefetch (SMEM)
                   ent_ref, rel_ref,                   # tables, VMEM-resident
                   o_ref,                              # [TB, 1] scores
                   diff_ref,                           # [TB, D] f32 scratch
                   *, block_b):
    """One batch tile: gather rows by index, compute -sum(|h + r - t|)."""
    base = pl.program_id(0) * block_b

    def gather_row(j, carry):
        h = h_idx_ref[base + j]
        r = r_idx_ref[base + j]
        t = t_idx_ref[base + j]
        # Dynamic single-row slices from the VMEM tables; fuse h + r - t on the
        # fly so each row costs 3 loads + 1 store of one [1, D] vreg row.
        diff_ref[pl.ds(j, 1), :] = (
            ent_ref[pl.ds(h, 1), :]
            + rel_ref[pl.ds(r, 1), :]
            - ent_ref[pl.ds(t, 1), :]
        )
        return carry

    # Unrolled so the LLO scheduler can overlap the dynamic loads/stores.
    lax.fori_loop(0, block_b, gather_row, 0, unroll=8)

    # Vectorized |.| and lane-axis (last-dim) reduction for the whole tile.
    o_ref[...] = -jnp.sum(jnp.abs(diff_ref[...]), axis=-1, keepdims=True)


def transe_score_pallas(entity_emb, relation_emb, head, rel, tail, *,
                        block_b=512):
    """score[b] = -||E[head[b]] + R[rel[b]] - E[tail[b]]||_1  via Pallas.

    Args:
      entity_emb:   [E, D] f32, D a multiple of 128.
      relation_emb: [R, D] f32.
      head, rel, tail: [B] integer index vectors.
    Returns:
      [B] f32 scores.
    """
    E, D = entity_emb.shape
    R, D2 = relation_emb.shape
    assert D == D2 and D % 128 == 0, "embedding dim must be lane-aligned (x128)"

    B = head.shape[0]
    head = head.astype(jnp.int32)
    rel = rel.astype(jnp.int32)
    tail = tail.astype(jnp.int32)

    # Batch tile: big enough to amortize per-grid-step overhead, small enough
    # that scratch + resident tables stay well inside VMEM (even on v7x 64MiB).
    block_b = min(block_b, _round_up(B, 8))
    b_pad = _round_up(B, block_b)
    if b_pad != B:
        pad = b_pad - B
        # Padding rows gather entity/relation 0; their scores are sliced off.
        head = jnp.pad(head, (0, pad))
        rel = jnp.pad(rel, (0, pad))
        tail = jnp.pad(tail, (0, pad))

    grid = (b_pad // block_b,)
    kernel = functools.partial(_transe_kernel, block_b=block_b)

    out = pl.pallas_call(
        kernel,
        out_shape=jax.ShapeDtypeStruct((b_pad, 1), jnp.float32),
        grid_spec=pltpu.PrefetchScalarGridSpec(
            num_scalar_prefetch=3,          # head, rel, tail index vectors
            grid=grid,
            in_specs=[
                # Full tables; constant index_map => DMA'd once, kept resident.
                pl.BlockSpec((E, D), lambda i, h, r, t: (0, 0)),
                pl.BlockSpec((R, D), lambda i, h, r, t: (0, 0)),
            ],
            out_specs=pl.BlockSpec((block_b, 1), lambda i, h, r, t: (i, 0)),
            scratch_shapes=[pltpu.VMEM((block_b, D), jnp.float32)],
        ),
        compiler_params=pltpu.CompilerParams(
            dimension_semantics=("parallel",)),   # shard tiles across TCs (v7x)
    )(head, rel, tail, entity_emb, relation_emb)

    return out[:B, 0]


class TransE:
    """JAX/Pallas port of the PyTorch TransE module."""

    def __init__(self, num_entities, num_relations, embedding_dim=100, key=None):
        if key is None:
            key = jax.random.PRNGKey(0)
        k_ent, k_rel = jax.random.split(key)
        self.embedding_dim = embedding_dim
        d_pad = _round_up(embedding_dim, 128)
        # nn.Embedding default init: N(0, 1).
        ent = jax.random.normal(k_ent, (num_entities, embedding_dim),
                                dtype=jnp.float32)
        rel = jax.random.normal(k_rel, (num_relations, embedding_dim),
                                dtype=jnp.float32)
        # Lane-align D to a multiple of 128; zero columns add 0 to the L1 sum.
        self.entity_embeddings = jnp.pad(ent, ((0, 0), (0, d_pad - embedding_dim)))
        self.relation_embeddings = jnp.pad(rel, ((0, 0), (0, d_pad - embedding_dim)))

    def __call__(self, head, rel, tail):
        return transe_score_pallas(self.entity_embeddings,
                                   self.relation_embeddings,
                                   head, rel, tail)


if __name__ == "__main__":
    num_entities = 16
    num_relations = 4
    embedding_dim = 128
    batch = 8

    key = jax.random.PRNGKey(0)
    k_model, k_h, k_r, k_t = jax.random.split(key, 4)

    model = TransE(num_entities, num_relations, embedding_dim, key=k_model)

    head = jax.random.randint(k_h, (batch,), 0, num_entities, dtype=jnp.int32)
    rel = jax.random.randint(k_r, (batch,), 0, num_relations, dtype=jnp.int32)
    tail = jax.random.randint(k_t, (batch,), 0, num_entities, dtype=jnp.int32)

    score = model(head, rel, tail)
    score = jax.block_until_ready(score)

    # Pure-JAX reference check of the forward semantics.
    h_e = model.entity_embeddings[head]
    r_e = model.relation_embeddings[rel]
    t_e = model.entity_embeddings[tail]
    ref = -jnp.sum(jnp.abs(h_e + r_e - t_e), axis=1)

    assert score.shape == (batch,)
    assert jnp.allclose(score, ref, atol=1e-5, rtol=1e-5)

    print("KERNEL_OK")
</pallas_src>

<mosaic_0001>
module attributes {stable_mosaic.version = 11 : i64} {
  func.func @_transe_kernel(%arg0: i32, %arg1: memref<8xi32, #tpu.memory_space<smem>>, %arg2: memref<8xi32, #tpu.memory_space<smem>>, %arg3: memref<8xi32, #tpu.memory_space<smem>>, %arg4: memref<16x128xf32, #tpu.memory_space<vmem>>, %arg5: memref<4x128xf32, #tpu.memory_space<vmem>>, %arg6: memref<8x1xf32, #tpu.memory_space<vmem>>, %arg7: memref<8x128xf32, #tpu.memory_space<vmem>>) attributes {dimension_semantics = [#tpu.dimension_semantics<parallel>], iteration_bounds = array<i64: 1>, scalar_prefetch = 3 : i64, scratch_operands = 1 : i64, tpu.core_type = #tpu.core_type<tc>, window_params = [{pipeline_mode = #tpu.pipeline_mode<synchronous>, transform_indices = @transform_0, window_bounds = array<i64: 16, 128>}, {pipeline_mode = #tpu.pipeline_mode<synchronous>, transform_indices = @transform_1, window_bounds = array<i64: 4, 128>}, {transform_indices = @transform_2, window_bounds = array<i64: 8, 1>}]} {
    %c8_i32 = arith.constant 8 : i32
    %0 = arith.muli %arg0, %c8_i32 : i32
    %c0_i32 = arith.constant 0 : i32
    %1 = arith.addi %0, %c0_i32 : i32
    %2 = arith.index_cast %1 : i32 to index
    %3 = memref.load %arg1[%2] : memref<8xi32, #tpu.memory_space<smem>>
    %4 = arith.addi %0, %c0_i32 : i32
    %5 = arith.index_cast %4 : i32 to index
    %6 = memref.load %arg2[%5] : memref<8xi32, #tpu.memory_space<smem>>
    %7 = arith.addi %0, %c0_i32 : i32
    %8 = arith.index_cast %7 : i32 to index
    %9 = memref.load %arg3[%8] : memref<8xi32, #tpu.memory_space<smem>>
    %10 = arith.index_cast %3 : i32 to index
    %c0 = arith.constant 0 : index
    %11 = vector.load %arg4[%10, %c0] : memref<16x128xf32, #tpu.memory_space<vmem>>, vector<1x128xf32>
    %12 = arith.index_cast %6 : i32 to index
    %c0_0 = arith.constant 0 : index
    %13 = vector.load %arg5[%12, %c0_0] : memref<4x128xf32, #tpu.memory_space<vmem>>, vector<1x128xf32>
    %14 = arith.addf %11, %13 : vector<1x128xf32>
    %15 = arith.index_cast %9 : i32 to index
    %c0_1 = arith.constant 0 : index
    %16 = vector.load %arg4[%15, %c0_1] : memref<16x128xf32, #tpu.memory_space<vmem>>, vector<1x128xf32>
    %17 = arith.subf %14, %16 : vector<1x128xf32>
    %18 = arith.index_cast %c0_i32 : i32 to index
    %c0_2 = arith.constant 0 : index
    %19 = vector.load %arg7[%18, %c0_2] : memref<8x128xf32, #tpu.memory_space<vmem>>, vector<1x128xf32>
    tpu.vector_store %arg7[%18, %c0_2], %17 {strides = array<i32>} : memref<8x128xf32, #tpu.memory_space<vmem>>, vector<1x128xf32>,
    %c1_i32 = arith.constant 1 : i32
    %20 = arith.addi %0, %c1_i32 : i32
    %21 = arith.index_cast %20 : i32 to index
    %22 = memref.load %arg1[%21] : memref<8xi32, #tpu.memory_space<smem>>
    %23 = arith.addi %0, %c1_i32 : i32
    %24 = arith.index_cast %23 : i32 to index
    %25 = memref.load %arg2[%24] : memref<8xi32, #tpu.memory_space<smem>>
    %26 = arith.addi %0, %c1_i32 : i32
    %27 = arith.index_cast %26 : i32 to index
    %28 = memref.load %arg3[%27] : memref<8xi32, #tpu.memory_space<smem>>
    %29 = arith.index_cast %22 : i32 to index
    %c0_3 = arith.constant 0 : index
    %30 = vector.load %arg4[%29, %c0_3] : memref<16x128xf32, #tpu.memory_space<vmem>>, vector<1x128xf32>
    %31 = arith.index_cast %25 : i32 to index
    %c0_4 = arith.constant 0 : index
    %32 = vector.load %arg5[%31, %c0_4] : memref<4x128xf32, #tpu.memory_space<vmem>>, vector<1x128xf32>
    %33 = arith.addf %30, %32 : vector<1x128xf32>
    %34 = arith.index_cast %28 : i32 to index
    %c0_5 = arith.constant 0 : index
    %35 = vector.load %arg4[%34, %c0_5] : memref<16x128xf32, #tpu.memory_space<vmem>>, vector<1x128xf32>
    %36 = arith.subf %33, %35 : vector<1x128xf32>
    %37 = arith.index_cast %c1_i32 : i32 to index
    %c0_6 = arith.constant 0 : index
    %38 = vector.load %arg7[%37, %c0_6] : memref<8x128xf32, #tpu.memory_space<vmem>>, vector<1x128xf32>
    tpu.vector_store %arg7[%37, %c0_6], %36 {strides = array<i32>} : memref<8x128xf32, #tpu.memory_space<vmem>>, vector<1x128xf32>,
    %c2_i32 = arith.constant 2 : i32
    %39 = arith.addi %0, %c2_i32 : i32
    %40 = arith.index_cast %39 : i32 to index
    %41 = memref.load %arg1[%40] : memref<8xi32, #tpu.memory_space<smem>>
    %42 = arith.addi %0, %c2_i32 : i32
    %43 = arith.index_cast %42 : i32 to index
    %44 = memref.load %arg2[%43] : memref<8xi32, #tpu.memory_space<smem>>
    %45 = arith.addi %0, %c2_i32 : i32
    %46 = arith.index_cast %45 : i32 to index
    %47 = memref.load %arg3[%46] : memref<8xi32, #tpu.memory_space<smem>>
    %48 = arith.index_cast %41 : i32 to index
    %c0_7 = arith.constant 0 : index
    %49 = vector.load %arg4[%48, %c0_7] : memref<16x128xf32, #tpu.memory_space<vmem>>, vector<1x128xf32>
    %50 = arith.index_cast %44 : i32 to index
    %c0_8 = arith.constant 0 : index
    %51 = vector.load %arg5[%50, %c0_8] : memref<4x128xf32, #tpu.memory_space<vmem>>, vector<1x128xf32>
    %52 = arith.addf %49, %51 : vector<1x128xf32>
    %53 = arith.index_cast %47 : i32 to index
    %c0_9 = arith.constant 0 : index
    %54 = vector.load %arg4[%53, %c0_9] : memref<16x128xf32, #tpu.memory_space<vmem>>, vector<1x128xf32>
    %55 = arith.subf %52, %54 : vector<1x128xf32>
    %56 = arith.index_cast %c2_i32 : i32 to index
    %c0_10 = arith.constant 0 : index
    %57 = vector.load %arg7[%56, %c0_10] : memref<8x128xf32, #tpu.memory_space<vmem>>, vector<1x128xf32>
    tpu.vector_store %arg7[%56, %c0_10], %55 {strides = array<i32>} : memref<8x128xf32, #tpu.memory_space<vmem>>, vector<1x128xf32>,
    %c3_i32 = arith.constant 3 : i32
    %58 = arith.addi %0, %c3_i32 : i32
    %59 = arith.index_cast %58 : i32 to index
    %60 = memref.load %arg1[%59] : memref<8xi32, #tpu.memory_space<smem>>
    %61 = arith.addi %0, %c3_i32 : i32
    %62 = arith.index_cast %61 : i32 to index
    %63 = memref.load %arg2[%62] : memref<8xi32, #tpu.memory_space<smem>>
    %64 = arith.addi %0, %c3_i32 : i32
    %65 = arith.index_cast %64 : i32 to index
    %66 = memref.load %arg3[%65] : memref<8xi32, #tpu.memory_space<smem>>
    %67 = arith.index_cast %60 : i32 to index
    %c0_11 = arith.constant 0 : index
    %68 = vector.load %arg4[%67, %c0_11] : memref<16x128xf32, #tpu.memory_space<vmem>>, vector<1x128xf32>
    %69 = arith.index_cast %63 : i32 to index
    %c0_12 = arith.constant 0 : index
    %70 = vector.load %arg5[%69, %c0_12] : memref<4x128xf32, #tpu.memory_space<vmem>>, vector<1x128xf32>
    %71 = arith.addf %68, %70 : vector<1x128xf32>
    %72 = arith.index_cast %66 : i32 to index
    %c0_13 = arith.constant 0 : index
    %73 = vector.load %arg4[%72, %c0_13] : memref<16x128xf32, #tpu.memory_space<vmem>>, vector<1x128xf32>
    %74 = arith.subf %71, %73 : vector<1x128xf32>
    %75 = arith.index_cast %c3_i32 : i32 to index
    %c0_14 = arith.constant 0 : index
    %76 = vector.load %arg7[%75, %c0_14] : memref<8x128xf32, #tpu.memory_space<vmem>>, vector<1x128xf32>
    tpu.vector_store %arg7[%75, %c0_14], %74 {strides = array<i32>} : memref<8x128xf32, #tpu.memory_space<vmem>>, vector<1x128xf32>,
    %c4_i32 = arith.constant 4 : i32
    %77 = arith.addi %0, %c4_i32 : i32
    %78 = arith.index_cast %77 : i32 to index
    %79 = memref.load %arg1[%78] : memref<8xi32, #tpu.memory_space<smem>>
    %80 = arith.addi %0, %c4_i32 : i32
    %81 = arith.index_cast %80 : i32 to index
    %82 = memref.load %arg2[%81] : memref<8xi32, #tpu.memory_space<smem>>
    %83 = arith.addi %0, %c4_i32 : i32
    %84 = arith.index_cast %83 : i32 to index
    %85 = memref.load %arg3[%84] : memref<8xi32, #tpu.memory_space<smem>>
    %86 = arith.index_cast %79 : i32 to index
    %c0_15 = arith.constant 0 : index
    %87 = vector.load %arg4[%86, %c0_15] : memref<16x128xf32, #tpu.memory_space<vmem>>, vector<1x128xf32>
    %88 = arith.index_cast %82 : i32 to index
    %c0_16 = arith.constant 0 : index
    %89 = vector.load %arg5[%88, %c0_16] : memref<4x128xf32, #tpu.memory_space<vmem>>, vector<1x128xf32>
    %90 = arith.addf %87, %89 : vector<1x128xf32>
    %91 = arith.index_cast %85 : i32 to index
    %c0_17 = arith.constant 0 : index
    %92 = vector.load %arg4[%91, %c0_17] : memref<16x128xf32, #tpu.memory_space<vmem>>, vector<1x128xf32>
    %93 = arith.subf %90, %92 : vector<1x128xf32>
    %94 = arith.index_cast %c4_i32 : i32 to index
    %c0_18 = arith.constant 0 : index
    %95 = vector.load %arg7[%94, %c0_18] : memref<8x128xf32, #tpu.memory_space<vmem>>, vector<1x128xf32>
    tpu.vector_store %arg7[%94, %c0_18], %93 {strides = array<i32>} : memref<8x128xf32, #tpu.memory_space<vmem>>, vector<1x128xf32>,
    %c5_i32 = arith.constant 5 : i32
    %96 = arith.addi %0, %c5_i32 : i32
    %97 = arith.index_cast %96 : i32 to index
    %98 = memref.load %arg1[%97] : memref<8xi32, #tpu.memory_space<smem>>
    %99 = arith.addi %0, %c5_i32 : i32
    %100 = arith.index_cast %99 : i32 to index
    %101 = memref.load %arg2[%100] : memref<8xi32, #tpu.memory_space<smem>>
    %102 = arith.addi %0, %c5_i32 : i32
    %103 = arith.index_cast %102 : i32 to index
    %104 = memref.load %arg3[%103] : memref<8xi32, #tpu.memory_space<smem>>
    %105 = arith.index_cast %98 : i32 to index
    %c0_19 = arith.constant 0 : index
    %106 = vector.load %arg4[%105, %c0_19] : memref<16x128xf32, #tpu.memory_space<vmem>>, vector<1x128xf32>
    %107 = arith.index_cast %101 : i32 to index
    %c0_20 = arith.constant 0 : index
    %108 = vector.load %arg5[%107, %c0_20] : memref<4x128xf32, #tpu.memory_space<vmem>>, vector<1x128xf32>
    %109 = arith.addf %106, %108 : vector<1x128xf32>
    %110 = arith.index_cast %104 : i32 to index
    %c0_21 = arith.constant 0 : index
    %111 = vector.load %arg4[%110, %c0_21] : memref<16x128xf32, #tpu.memory_space<vmem>>, vector<1x128xf32>
    %112 = arith.subf %109, %111 : vector<1x128xf32>
    %113 = arith.index_cast %c5_i32 : i32 to index
    %c0_22 = arith.constant 0 : index
    %114 = vector.load %arg7[%113, %c0_22] : memref<8x128xf32, #tpu.memory_space<vmem>>, vector<1x128xf32>
    tpu.vector_store %arg7[%113, %c0_22], %112 {strides = array<i32>} : memref<8x128xf32, #tpu.memory_space<vmem>>, vector<1x128xf32>,
    %c6_i32 = arith.constant 6 : i32
    %115 = arith.addi %0, %c6_i32 : i32
    %116 = arith.index_cast %115 : i32 to index
    %117 = memref.load %arg1[%116] : memref<8xi32, #tpu.memory_space<smem>>
    %118 = arith.addi %0, %c6_i32 : i32
    %119 = arith.index_cast %118 : i32 to index
    %120 = memref.load %arg2[%119] : memref<8xi32, #tpu.memory_space<smem>>
    %121 = arith.addi %0, %c6_i32 : i32
    %122 = arith.index_cast %121 : i32 to index
    %123 = memref.load %arg3[%122] : memref<8xi32, #tpu.memory_space<smem>>
    %124 = arith.index_cast %117 : i32 to index
    %c0_23 = arith.constant 0 : index
    %125 = vector.load %arg4[%124, %c0_23] : memref<16x128xf32, #tpu.memory_space<vmem>>, vector<1x128xf32>
    %126 = arith.index_cast %120 : i32 to index
    %c0_24 = arith.constant 0 : index
    %127 = vector.load %arg5[%126, %c0_24] : memref<4x128xf32, #tpu.memory_space<vmem>>, vector<1x128xf32>
    %128 = arith.addf %125, %127 : vector<1x128xf32>
    %129 = arith.index_cast %123 : i32 to index
    %c0_25 = arith.constant 0 : index
    %130 = vector.load %arg4[%129, %c0_25] : memref<16x128xf32, #tpu.memory_space<vmem>>, vector<1x128xf32>
    %131 = arith.subf %128, %130 : vector<1x128xf32>
    %132 = arith.index_cast %c6_i32 : i32 to index
    %c0_26 = arith.constant 0 : index
    %133 = vector.load %arg7[%132, %c0_26] : memref<8x128xf32, #tpu.memory_space<vmem>>, vector<1x128xf32>
    tpu.vector_store %arg7[%132, %c0_26], %131 {strides = array<i32>} : memref<8x128xf32, #tpu.memory_space<vmem>>, vector<1x128xf32>,
    %c7_i32 = arith.constant 7 : i32
    %134 = arith.addi %0, %c7_i32 : i32
    %135 = arith.index_cast %134 : i32 to index
    %136 = memref.load %arg1[%135] : memref<8xi32, #tpu.memory_space<smem>>
    %137 = arith.addi %0, %c7_i32 : i32
    %138 = arith.index_cast %137 : i32 to index
    %139 = memref.load %arg2[%138] : memref<8xi32, #tpu.memory_space<smem>>
    %140 = arith.addi %0, %c7_i32 : i32
    %141 = arith.index_cast %140 : i32 to index
    %142 = memref.load %arg3[%141] : memref<8xi32, #tpu.memory_space<smem>>
    %143 = arith.index_cast %136 : i32 to index
    %c0_27 = arith.constant 0 : index
    %144 = vector.load %arg4[%143, %c0_27] : memref<16x128xf32, #tpu.memory_space<vmem>>, vector<1x128xf32>
    %145 = arith.index_cast %139 : i32 to index
    %c0_28 = arith.constant 0 : index
    %146 = vector.load %arg5[%145, %c0_28] : memref<4x128xf32, #tpu.memory_space<vmem>>, vector<1x128xf32>
    %147 = arith.addf %144, %146 : vector<1x128xf32>
    %148 = arith.index_cast %142 : i32 to index
    %c0_29 = arith.constant 0 : index
    %149 = vector.load %arg4[%148, %c0_29] : memref<16x128xf32, #tpu.memory_space<vmem>>, vector<1x128xf32>
    %150 = arith.subf %147, %149 : vector<1x128xf32>
    %151 = arith.index_cast %c7_i32 : i32 to index
    %c0_30 = arith.constant 0 : index
    %152 = vector.load %arg7[%151, %c0_30] : memref<8x128xf32, #tpu.memory_space<vmem>>, vector<1x128xf32>
    tpu.vector_store %arg7[%151, %c0_30], %150 {strides = array<i32>} : memref<8x128xf32, #tpu.memory_space<vmem>>, vector<1x128xf32>,
    %c8_i32_31 = arith.constant 8 : i32
    %c0_32 = arith.constant 0 : index
    %c0_33 = arith.constant 0 : index
    %153 = vector.load %arg7[%c0_32, %c0_33] : memref<8x128xf32, #tpu.memory_space<vmem>>, vector<8x128xf32>
    %154 = math.absf %153 : vector<8x128xf32>
    %cst = arith.constant dense<0.000000e+00> : vector<8xf32>
    %155 = vector.multi_reduction <add>, %154, %cst [1] : vector<8x128xf32> to vector<8xf32>
    %156 = vector.shape_cast %155 : vector<8xf32> to vector<8x1xf32>
    %cst_34 = arith.constant 0.000000e+00 : f32
    %157 = vector.broadcast %cst_34 : f32 to vector<8x1xf32>
    %158 = arith.subf %157, %156 : vector<8x1xf32>
    %c0_35 = arith.constant 0 : index
    %c0_36 = arith.constant 0 : index
    %159 = vector.load %arg6[%c0_35, %c0_36] : memref<8x1xf32, #tpu.memory_space<vmem>>, vector<8x1xf32>
    tpu.vector_store %arg6[%c0_35, %c0_36], %158 {strides = array<i32>} : memref<8x1xf32, #tpu.memory_space<vmem>>, vector<8x1xf32>,
    return
  }
  func.func @transform_0(%arg0: i32, %arg1: memref<8xi32, #tpu.memory_space<smem>>, %arg2: memref<8xi32, #tpu.memory_space<smem>>, %arg3: memref<8xi32, #tpu.memory_space<smem>>) -> (i32, i32) {
    %c0_i32 = arith.constant 0 : i32
    %c0_i32_0 = arith.constant 0 : i32
    %c0_i32_1 = arith.constant 0 : i32
    return %c0_i32, %c0_i32_0 : i32, i32
  }
  func.func @transform_1(%arg0: i32, %arg1: memref<8xi32, #tpu.memory_space<smem>>, %arg2: memref<8xi32, #tpu.memory_space<smem>>, %arg3: memref<8xi32, #tpu.memory_space<smem>>) -> (i32, i32) {
    %c0_i32 = arith.constant 0 : i32
    %c0_i32_0 = arith.constant 0 : i32
    %c0_i32_1 = arith.constant 0 : i32
    return %c0_i32, %c0_i32_0 : i32, i32
  }
  func.func @transform_2(%arg0: i32, %arg1: memref<8xi32, #tpu.memory_space<smem>>, %arg2: memref<8xi32, #tpu.memory_space<smem>>, %arg3: memref<8xi32, #tpu.memory_space<smem>>) -> (i32, i32) {
    %c0_i32 = arith.constant 0 : i32
    %c0_i32_0 = arith.constant 0 : i32
    return %arg0, %c0_i32 : i32, i32
  }
}

</mosaic_0001>

<llo_original>
// kernel: tpu_custom_call.1
$region0: #{tpu_custom_call.1}
  #allocation0 [shape = 'u32[]', space=smem, size = 0x4, offset = 0x4, fixed_abs, tag = 'smem constant byte address 0x4 - core index']
  #allocation1 [shape = 'u32[144,128]{1,0:T(1,128)}', space=vmem, size = 0x12000, scoped, tag = 'internal scratch']
  #allocation2 [shape = 'f32[8,128]{1,0:T(8,128)}', space=vmem, size = 0x1000, scoped, tag = 'scratch operand']
  #allocation3 [shape = 's32[1]{0}', space=sflag, size = 0x4, scoped, tag = 'scoped memory for tpu_custom_call.1']
  #allocation4 [shape = 'u8[512]{0}', space=smem, size = 0x200, scoped, tag = 'prefetched SMEM operand 0']
  #allocation5 [shape = 'u8[512]{0}', space=smem, size = 0x200, scoped, tag = 'prefetched SMEM operand 1']
  #allocation6 [shape = 'u8[512]{0}', space=smem, size = 0x200, scoped, tag = 'prefetched SMEM operand 2']
  %s0 = inlined_call_operand.hbm [shape: s32[8], index: 0, kind: input, shape index: {}]
  %s1 = inlined_call_operand.vmem [shape: s32[8], index: 1, kind: input, shape index: {}]
  %s2 = inlined_call_operand.vmem [shape: s32[8], index: 2, kind: input, shape index: {}]
  %s3 = inlined_call_operand.hbm [shape: f32[16,128], index: 3, kind: input, shape index: {}]
  %s4 = inlined_call_operand.vmem [shape: f32[4,128], index: 4, kind: input, shape index: {}]
  %s5 = inlined_call_operand.vmem [shape: f32[8,1], index: 5, kind: output, shape index: {}]
  %s6 = sld [smem:[#allocation0]]
  $region22: #{tpu_custom_call.1} parent=0
    _
  %s8 = ssub.s32 1, %s6
  %s9 = scalar_select 0, %s8, %s6
  %11 = dma.hbm_to_smem %s0, 16, [#allocation4], [#allocation3]
  %s12 = sshll.u32 %s1, 4
  %s13 = int_to_ptr.vmem [resolvable:$true] %s12
  %15 = dma.vmem_to_smem %s13, 16, [#allocation5], [#allocation3]
  %s16 = sshll.u32 %s2, 4
  %s17 = int_to_ptr.vmem [resolvable:$true] %s16
  %19 = dma.vmem_to_smem %s17, 16, [#allocation6], [#allocation3]
  %20 = dma.done [#allocation3], 48
  %21 = sfence
  $region1: #{tpu_custom_call.1} parent=0
    #allocation7 [shape = 'u8[8192]{0}', space=vmem, size = 0x2000, scoped, tag = 'input window, operand 3, single buffered']
    #allocation8 [shape = 's32[1]{0}', space=sflag, size = 0x4, scoped, tag = 'scoped memory for tpu_custom_call.1']
    %22 = vsyncpa [#allocation8], 0
    // Predicated region
    $region2: #{tpu_custom_call.1} parent=1 // pred_check
      _
    $region3: #{tpu_custom_call.1} parent=1 // pred_check_branch
      %24 = sbr.rel (0) target = $region5
    $region4: #{tpu_custom_call.1} parent=1 // pred_region
      %s26 = ssub.s32 256, 256
      %27 = vsyncadd [#allocation8], %s26
      %s28 = sshll.u32 [#allocation7], 4
      %s29 = int_to_ptr.vmem [resolvable:$true] %s28
      %34 = dma.hbm_to_vmem [thread:$0]  %s3, 256, %s29, [#allocation8], 128, 128, 8
    $region5: #{tpu_custom_call.1} parent=1 // pred_fallthru
      _
    // Predicated region
    $region6: #{tpu_custom_call.1} parent=1 // pred_check
      _
    $region7: #{tpu_custom_call.1} parent=1 // pred_check_branch
      %36 = sbr.rel (0) target = $region9
    $region8: #{tpu_custom_call.1} parent=1 // pred_region
      _
    $region9: #{tpu_custom_call.1} parent=1 // pred_fallthru
      _
    // Predicated region
    $region10: #{tpu_custom_call.1} parent=1 // pred_check
      _
    $region11: #{tpu_custom_call.1} parent=1 // pred_check_branch
      %38 = sbr.rel (0) target = $region13
    $region12: #{tpu_custom_call.1} parent=1 // pred_region
      %39 = dma.done [#allocation8], 256
    $region13: #{tpu_custom_call.1} parent=1 // pred_fallthru
      _
    %s40 = smul.u32 0, 8
    %s41 = sld [smem:[#allocation4 + %s40]]
    %s42 = sld [smem:[#allocation5 + %s40]]
    %s43 = sld [smem:[#allocation6 + %s40]]
    %s44 = scalar_lea.vmem [#allocation7], %s41
    %v45 = vld [vmem:[%s44] sm:$0x1]
    %s46 = scalar_lea.vmem %s4, %s42
    %v47 = vld [vmem:[%s46] sm:$0x1]
    %v48 = vadd.f32 %v45, %v47
    %s49 = scalar_lea.vmem [#allocation7], %s43
    %v50 = vld [vmem:[%s49] sm:$0x1]
    %v51 = vsub.f32 %v48, %v50
    %52 = vst [vmem:[#allocation2] sm:$0x1] %v51
    %s53 = sadd.s32 %s40, 1
    %s54 = sld [smem:[#allocation4 + %s53]]
    %s55 = sld [smem:[#allocation5 + %s53]]
    %s56 = sld [smem:[#allocation6 + %s53]]
    %s57 = scalar_lea.vmem [#allocation7], %s54
    %v58 = vld [vmem:[%s57] sm:$0x1]
    %s59 = scalar_lea.vmem %s4, %s55
    %v60 = vld [vmem:[%s59] sm:$0x1]
    %v61 = vadd.f32 %v58, %v60
    %s62 = scalar_lea.vmem [#allocation7], %s56
    %v63 = vld [vmem:[%s62] sm:$0x1]
    %v64 = vsub.f32 %v61, %v63
    %65 = vst [vmem:[#allocation2 + $0x1] sm:$0x1] %v64
    %s66 = sadd.s32 %s40, 2
    %s67 = sld [smem:[#allocation4 + %s66]]
    %s68 = sld [smem:[#allocation5 + %s66]]
    %s69 = sld [smem:[#allocation6 + %s66]]
    %s70 = scalar_lea.vmem [#allocation7], %s67
    %v71 = vld [vmem:[%s70] sm:$0x1]
    %s72 = scalar_lea.vmem %s4, %s68
    %v73 = vld [vmem:[%s72] sm:$0x1]
    %v74 = vadd.f32 %v71, %v73
    %s75 = scalar_lea.vmem [#allocation7], %s69
    %v76 = vld [vmem:[%s75] sm:$0x1]
    %v77 = vsub.f32 %v74, %v76
    %78 = vst [vmem:[#allocation2 + $0x2] sm:$0x1] %v77
    %s79 = sadd.s32 %s40, 3
    %s80 = sld [smem:[#allocation4 + %s79]]
    %s81 = sld [smem:[#allocation5 + %s79]]
    %s82 = sld [smem:[#allocation6 + %s79]]
    %s83 = scalar_lea.vmem [#allocation7], %s80
    %v84 = vld [vmem:[%s83] sm:$0x1]
    %s85 = scalar_lea.vmem %s4, %s81
    %v86 = vld [vmem:[%s85] sm:$0x1]
    %v87 = vadd.f32 %v84, %v86
    %s88 = scalar_lea.vmem [#allocation7], %s82
    %v89 = vld [vmem:[%s88] sm:$0x1]
    %v90 = vsub.f32 %v87, %v89
    %91 = vst [vmem:[#allocation2 + $0x3] sm:$0x1] %v90
    %s92 = sadd.s32 %s40, 4
    %s93 = sld [smem:[#allocation4 + %s92]]
    %s94 = sld [smem:[#allocation5 + %s92]]
    %s95 = sld [smem:[#allocation6 + %s92]]
    %s96 = scalar_lea.vmem [#allocation7], %s93
    %v97 = vld [vmem:[%s96] sm:$0x1]
    %s98 = scalar_lea.vmem %s4, %s94
    %v99 = vld [vmem:[%s98] sm:$0x1]
    %v100 = vadd.f32 %v97, %v99
    %s101 = scalar_lea.vmem [#allocation7], %s95
    %v102 = vld [vmem:[%s101] sm:$0x1]
    %v103 = vsub.f32 %v100, %v102
    %104 = vst [vmem:[#allocation2 + $0x4] sm:$0x1] %v103
    %s105 = sadd.s32 %s40, 5
    %s106 = sld [smem:[#allocation4 + %s105]]
    %s107 = sld [smem:[#allocation5 + %s105]]
    %s108 = sld [smem:[#allocation6 + %s105]]
    %s109 = scalar_lea.vmem [#allocation7], %s106
    %v110 = vld [vmem:[%s109] sm:$0x1]
    %s111 = scalar_lea.vmem %s4, %s107
    %v112 = vld [vmem:[%s111] sm:$0x1]
    %v113 = vadd.f32 %v110, %v112
    %s114 = scalar_lea.vmem [#allocation7], %s108
    %v115 = vld [vmem:[%s114] sm:$0x1]
    %v116 = vsub.f32 %v113, %v115
    %117 = vst [vmem:[#allocation2 + $0x5] sm:$0x1] %v116
    %s118 = sadd.s32 %s40, 6
    %s119 = sld [smem:[#allocation4 + %s118]]
    %s120 = sld [smem:[#allocation5 + %s118]]
    %s121 = sld [smem:[#allocation6 + %s118]]
    %s122 = scalar_lea.vmem [#allocation7], %s119
    %v123 = vld [vmem:[%s122] sm:$0x1]
    %s124 = scalar_lea.vmem %s4, %s120
    %v125 = vld [vmem:[%s124] sm:$0x1]
    %v126 = vadd.f32 %v123, %v125
    %s127 = scalar_lea.vmem [#allocation7], %s121
    %v128 = vld [vmem:[%s127] sm:$0x1]
    %v129 = vsub.f32 %v126, %v128
    %130 = vst [vmem:[#allocation2 + $0x6] sm:$0x1] %v129
    %s131 = sadd.s32 %s40, 7
    %s132 = sld [smem:[#allocation4 + %s131]]
    %s133 = sld [smem:[#allocation5 + %s131]]
    %s134 = sld [smem:[#allocation6 + %s131]]
    %s135 = scalar_lea.vmem [#allocation7], %s132
    %v136 = vld [vmem:[%s135] sm:$0x1]
    %s137 = scalar_lea.vmem %s4, %s133
    %v138 = vld [vmem:[%s137] sm:$0x1]
    %v139 = vadd.f32 %v136, %v138
    %s140 = scalar_lea.vmem [#allocation7], %s134
    %v141 = vld [vmem:[%s140] sm:$0x1]
    %v142 = vsub.f32 %v139, %v141
    %143 = vst [vmem:[#allocation2 + $0x7] sm:$0x1] %v142
    %v144 = vld [vmem:[#allocation2] sm:$0xff]
    %v145 = vand.u32 2147483647, %v144
    %146 = vadd.xlane.f32.xlu0 %v145
    %v147 = vpop.xlane.xlu0 %146
    %v148 = vsub.f32 0.0, %v147
    %vm149 = vcmask 7168
    %150 = vst.msk [vmem:[%s5] sm:$0xff] %vm149, %v148
    // Predicated region
    $region14: #{tpu_custom_call.1} parent=1 // pred_check
      _
    $region15: #{tpu_custom_call.1} parent=1 // pred_check_branch
      %152 = sbr.rel (0) target = $region17
    $region16: #{tpu_custom_call.1} parent=1 // pred_region
      _
    $region17: #{tpu_custom_call.1} parent=1 // pred_fallthru
      _
    // Predicated region
    $region18: #{tpu_custom_call.1} parent=1 // pred_check
      _
    $region19: #{tpu_custom_call.1} parent=1 // pred_check_branch
      %154 = sbr.rel (0) target = $region21
    $region20: #{tpu_custom_call.1} parent=1 // pred_region
      _
    $region21: #{tpu_custom_call.1} parent=1 // pred_fallthru
      _
    %155 = vsyncpa [#allocation8], 1

</llo_original>
